<compile_context>
chip_gen: v6e
topology: v6e:2x2x1
jax: 0.10.0
libtpu: 0.0.40
codegen_flags: <defaults>
</compile_context>

<pallas_src>
import jax
import jax.numpy as jnp
from jax.experimental import pallas as pl
from jax.experimental.pallas import tpu as pltpu

EPS = 1e-5

# Row layout of the packed small-vector slab (16, 128).
ROW_B1, ROW_B2, ROW_B3, ROW_B5, ROW_B4 = 0, 1, 2, 3, 4
ROW_G32, ROW_BE32, ROW_G16, ROW_BE16, ROW_W4 = 5, 6, 7, 8, 9


def discriminator1_kernel(x_ref, w_ref, p_ref, o_ref):
    def bn_relu(h, gamma, beta):
        # BatchNorm1d, training mode: batch mean, biased batch variance.
        mean = jnp.mean(h, axis=0, keepdims=True)
        diff = h - mean
        var = jnp.mean(diff * diff, axis=0, keepdims=True)
        # Fold gamma into the rsqrt scale: one (1,F) mul instead of an (N,F) mul.
        scale = gamma * jax.lax.rsqrt(var + EPS)
        return jnp.maximum(diff * scale + beta, 0.0)

    x = x_ref[...]                                                   # (N, 64)

    # fc1 (64->32) + Norm32 + relu
    h = jnp.dot(x, w_ref[0:64, 0:32],
                preferred_element_type=jnp.float32) + p_ref[ROW_B1:ROW_B1 + 1, 0:32]
    h = bn_relu(h, p_ref[ROW_G32:ROW_G32 + 1, 0:32], p_ref[ROW_BE32:ROW_BE32 + 1, 0:32])

    # fc2 (32->16) + Norm16 + relu
    h = jnp.dot(h, w_ref[64:96, 0:16],
                preferred_element_type=jnp.float32) + p_ref[ROW_B2:ROW_B2 + 1, 0:16]
    h = bn_relu(h, p_ref[ROW_G16:ROW_G16 + 1, 0:16], p_ref[ROW_BE16:ROW_BE16 + 1, 0:16])

    # fc3 (16->16) + Norm16 (same affine params reused) + relu
    h = jnp.dot(h, w_ref[96:112, 0:16],
                preferred_element_type=jnp.float32) + p_ref[ROW_B3:ROW_B3 + 1, 0:16]
    h = bn_relu(h, p_ref[ROW_G16:ROW_G16 + 1, 0:16], p_ref[ROW_BE16:ROW_BE16 + 1, 0:16])

    # fc5 (16->4)
    d4 = jnp.dot(h, w_ref[112:128, 0:4],
                 preferred_element_type=jnp.float32) + p_ref[ROW_B5:ROW_B5 + 1, 0:4]

    # fc4 (4->1): tiny contraction -> VPU mul + lane reduce (no 4x1 MXU pass).
    w4_row = p_ref[ROW_W4:ROW_W4 + 1, 0:4]                           # (1, 4)
    d1 = jnp.sum(d4 * w4_row, axis=1, keepdims=True) + p_ref[ROW_B4:ROW_B4 + 1, 0:1]

    # Lane-dense packed output: d4 -> lanes 0:4, d1 -> lane 4, rest zero.
    o_ref[...] = jnp.zeros_like(o_ref)
    o_ref[:, 0:4] = d4
    o_ref[:, 4:5] = d1


def pack_params(p):
    """Pack all weights into one (128, 32) slab and all per-feature vectors
    into one (16, 128) slab: 3 DMA inputs total instead of 15."""
    w = jnp.zeros((128, 32), jnp.float32)
    w = w.at[0:64, 0:32].set(p["w1_t"])
    w = w.at[64:96, 0:16].set(p["w2_t"])
    w = w.at[96:112, 0:16].set(p["w3_t"])
    w = w.at[112:128, 0:4].set(p["w5_t"])

    s = jnp.zeros((16, 128), jnp.float32)
    s = s.at[ROW_B1, 0:32].set(p["b1"])
    s = s.at[ROW_B2, 0:16].set(p["b2"])
    s = s.at[ROW_B3, 0:16].set(p["b3"])
    s = s.at[ROW_B5, 0:4].set(p["b5"])
    s = s.at[ROW_B4, 0:1].set(p["b4"])
    s = s.at[ROW_G32, 0:32].set(p["g32"])
    s = s.at[ROW_BE32, 0:32].set(p["be32"])
    s = s.at[ROW_G16, 0:16].set(p["g16"])
    s = s.at[ROW_BE16, 0:16].set(p["be16"])
    s = s.at[ROW_W4, 0:4].set(p["w4_t"][:, 0])   # fc4 weight row
    return w, s


def discriminator1_forward(x, params):
    n = x.shape[0]
    w_slab, p_slab = pack_params(params)

    vmem = pl.BlockSpec(memory_space=pltpu.MemorySpace.VMEM)
    flops = 2 * n * (64 * 32 + 32 * 16 + 16 * 16 + 16 * 4 + 4 * 1) \
        + 8 * n * (32 + 16 + 16)                      # approx BN + relu elementwise
    bytes_accessed = 4 * (x.size + w_slab.size + p_slab.size + n * 128)

    packed = pl.pallas_call(
        discriminator1_kernel,
        out_shape=jax.ShapeDtypeStruct((n, 128), jnp.float32),
        in_specs=[vmem, vmem, vmem],
        out_specs=vmem,
        compiler_params=pltpu.CompilerParams(vmem_limit_bytes=32 * 1024 * 1024),
        cost_estimate=pl.CostEstimate(flops=flops, transcendentals=64,
                                      bytes_accessed=bytes_accessed),
    )(x, w_slab, p_slab)

    d4 = packed[:, 0:4]
    d1 = packed[:, 4:5]
    return d1, d4


def init_params(key):
    """Deterministic init; shapes match nn.Linear / nn.BatchNorm1d.
    Linear weights stored pre-transposed as (in, out) == PyTorch weight.T."""
    def linear(k, fan_in, fan_out):
        kw, kb = jax.random.split(k)
        bound = 1.0 / (fan_in ** 0.5)
        w_t = jax.random.uniform(kw, (fan_in, fan_out), jnp.float32, -bound, bound)
        b = jax.random.uniform(kb, (fan_out,), jnp.float32, -bound, bound)
        return w_t, b

    k1, k2, k3, k5, k4, kg = jax.random.split(key, 6)
    w1_t, b1 = linear(k1, 64, 32)
    w2_t, b2 = linear(k2, 32, 16)
    w3_t, b3 = linear(k3, 16, 16)
    w5_t, b5 = linear(k5, 16, 4)
    w4_t, b4 = linear(k4, 4, 1)
    # PyTorch default BN affine is gamma=1, beta=0; perturb slightly so the
    # correctness check exercises the gamma-folding / beta paths.
    kg1, kg2, kg3, kg4 = jax.random.split(kg, 4)
    g32 = 1.0 + 0.1 * jax.random.normal(kg1, (32,), jnp.float32)
    be32 = 0.1 * jax.random.normal(kg2, (32,), jnp.float32)
    g16 = 1.0 + 0.1 * jax.random.normal(kg3, (16,), jnp.float32)
    be16 = 0.1 * jax.random.normal(kg4, (16,), jnp.float32)
    return dict(w1_t=w1_t, b1=b1, w2_t=w2_t, b2=b2, w3_t=w3_t, b3=b3,
                w5_t=w5_t, b5=b5, w4_t=w4_t, b4=b4,
                g32=g32, be32=be32, g16=g16, be16=be16)


def discriminator1_reference(x, p):
    def bn_relu(h, g, b):
        m = jnp.mean(h, axis=0, keepdims=True)
        v = jnp.mean((h - m) ** 2, axis=0, keepdims=True)
        return jnp.maximum((h - m) / jnp.sqrt(v + EPS) * g + b, 0.0)

    h = bn_relu(x @ p["w1_t"] + p["b1"], p["g32"], p["be32"])
    h = bn_relu(h @ p["w2_t"] + p["b2"], p["g16"], p["be16"])
    h = bn_relu(h @ p["w3_t"] + p["b3"], p["g16"], p["be16"])
    d4 = h @ p["w5_t"] + p["b5"]
    d1 = d4 @ p["w4_t"] + p["b4"]
    return d1, d4


if __name__ == "__main__":
    key = jax.random.PRNGKey(0)
    kx, kp = jax.random.split(key)

    N = 8  # small, sublane-friendly batch (BatchNorm needs N > 1)
    x = jax.random.normal(kx, (N, 64), jnp.float32)
    params = init_params(kp)

    d1, d4 = discriminator1_forward(x, params)
    d1, d4 = jax.block_until_ready((d1, d4))

    r1, r4 = discriminator1_reference(x, params)
    assert d1.shape == (N, 1) and d4.shape == (N, 4)
    assert jnp.allclose(d4, r4, rtol=1e-4, atol=1e-4), "d_embeddings4 mismatch"
    assert jnp.allclose(d1, r1, rtol=1e-4, atol=1e-4), "d_embeddings1 mismatch"

    print("KERNEL_OK")
</pallas_src>

<mosaic_0001>
module attributes {stable_mosaic.version = 11 : i64} {
  func.func @discriminator1_kernel(%arg0: memref<8x64xf32, #tpu.memory_space<vmem>>, %arg1: memref<128x32xf32, #tpu.memory_space<vmem>>, %arg2: memref<16x128xf32, #tpu.memory_space<vmem>>, %arg3: memref<8x128xf32, #tpu.memory_space<vmem>>) attributes {dimension_semantics = [], scalar_prefetch = 0 : i64, scratch_operands = 0 : i64, tpu.core_type = #tpu.core_type<tc>} {
    %c0 = arith.constant 0 : index
    %c0_0 = arith.constant 0 : index
    %0 = vector.load %arg0[%c0, %c0_0] : memref<8x64xf32, #tpu.memory_space<vmem>>, vector<8x64xf32>
    %c0_1 = arith.constant 0 : index
    %c0_2 = arith.constant 0 : index
    %1 = vector.load %arg1[%c0_1, %c0_2] : memref<128x32xf32, #tpu.memory_space<vmem>>, vector<64x32xf32>
    %cst = arith.constant dense<0.000000e+00> : vector<8x32xf32>
    %2 = tpu.matmul %0, %1, %cst {dimension_numbers = #tpu.dot_dimension_numbers<[1], [0], [0], [1], [0, 0, 1, 1], [], []>} : vector<8x64xf32>, vector<64x32xf32>, vector<8x32xf32> -> vector<8x32xf32>
    %c0_3 = arith.constant 0 : index
    %c0_4 = arith.constant 0 : index
    %3 = vector.load %arg2[%c0_3, %c0_4] : memref<16x128xf32, #tpu.memory_space<vmem>>, vector<1x32xf32>
    %4 = vector.broadcast %3 : vector<1x32xf32> to vector<8x32xf32>
    %5 = arith.addf %2, %4 : vector<8x32xf32>
    %c5 = arith.constant 5 : index
    %c0_5 = arith.constant 0 : index
    %6 = vector.load %arg2[%c5, %c0_5] : memref<16x128xf32, #tpu.memory_space<vmem>>, vector<1x32xf32>
    %c6 = arith.constant 6 : index
    %c0_6 = arith.constant 0 : index
    %7 = vector.load %arg2[%c6, %c0_6] : memref<16x128xf32, #tpu.memory_space<vmem>>, vector<1x32xf32>
    %cst_7 = arith.constant dense<0.000000e+00> : vector<32xf32>
    %8 = vector.multi_reduction <add>, %5, %cst_7 [0] : vector<8x32xf32> to vector<32xf32>
    %9 = vector.shape_cast %8 : vector<32xf32> to vector<1x32xf32>
    %cst_8 = arith.constant 8.000000e+00 : f32
    %10 = vector.broadcast %cst_8 : f32 to vector<1x32xf32>
    %11 = arith.divf %9, %10 : vector<1x32xf32>
    %12 = vector.broadcast %11 : vector<1x32xf32> to vector<8x32xf32>
    %13 = arith.subf %5, %12 : vector<8x32xf32>
    %14 = arith.mulf %13, %13 : vector<8x32xf32>
    %cst_9 = arith.constant dense<0.000000e+00> : vector<32xf32>
    %15 = vector.multi_reduction <add>, %14, %cst_9 [0] : vector<8x32xf32> to vector<32xf32>
    %16 = vector.shape_cast %15 : vector<32xf32> to vector<1x32xf32>
    %cst_10 = arith.constant 8.000000e+00 : f32
    %17 = vector.broadcast %cst_10 : f32 to vector<1x32xf32>
    %18 = arith.divf %16, %17 : vector<1x32xf32>
    %cst_11 = arith.constant 9.99999974E-6 : f32
    %19 = vector.broadcast %cst_11 : f32 to vector<1x32xf32>
    %20 = arith.addf %18, %19 : vector<1x32xf32>
    %21 = math.rsqrt %20 : vector<1x32xf32>
    %22 = arith.mulf %6, %21 : vector<1x32xf32>
    %23 = vector.broadcast %22 : vector<1x32xf32> to vector<8x32xf32>
    %24 = arith.mulf %13, %23 : vector<8x32xf32>
    %25 = vector.broadcast %7 : vector<1x32xf32> to vector<8x32xf32>
    %26 = arith.addf %24, %25 : vector<8x32xf32>
    %cst_12 = arith.constant 0.000000e+00 : f32
    %27 = vector.broadcast %cst_12 : f32 to vector<8x32xf32>
    %28 = arith.maximumf %26, %27 : vector<8x32xf32>
    %c64 = arith.constant 64 : index
    %c0_13 = arith.constant 0 : index
    %29 = vector.load %arg1[%c64, %c0_13] : memref<128x32xf32, #tpu.memory_space<vmem>>, vector<32x16xf32>
    %cst_14 = arith.constant dense<0.000000e+00> : vector<8x16xf32>
    %30 = tpu.matmul %28, %29, %cst_14 {dimension_numbers = #tpu.dot_dimension_numbers<[1], [0], [0], [1], [0, 0, 1, 1], [], []>} : vector<8x32xf32>, vector<32x16xf32>, vector<8x16xf32> -> vector<8x16xf32>
    %c1 = arith.constant 1 : index
    %c0_15 = arith.constant 0 : index
    %31 = vector.load %arg2[%c1, %c0_15] : memref<16x128xf32, #tpu.memory_space<vmem>>, vector<1x16xf32>
    %32 = vector.broadcast %31 : vector<1x16xf32> to vector<8x16xf32>
    %33 = arith.addf %30, %32 : vector<8x16xf32>
    %c7 = arith.constant 7 : index
    %c0_16 = arith.constant 0 : index
    %34 = vector.load %arg2[%c7, %c0_16] : memref<16x128xf32, #tpu.memory_space<vmem>>, vector<1x16xf32>
    %c8 = arith.constant 8 : index
    %c0_17 = arith.constant 0 : index
    %35 = vector.load %arg2[%c8, %c0_17] : memref<16x128xf32, #tpu.memory_space<vmem>>, vector<1x16xf32>
    %cst_18 = arith.constant dense<0.000000e+00> : vector<16xf32>
    %36 = vector.multi_reduction <add>, %33, %cst_18 [0] : vector<8x16xf32> to vector<16xf32>
    %37 = vector.shape_cast %36 : vector<16xf32> to vector<1x16xf32>
    %cst_19 = arith.constant 8.000000e+00 : f32
    %38 = vector.broadcast %cst_19 : f32 to vector<1x16xf32>
    %39 = arith.divf %37, %38 : vector<1x16xf32>
    %40 = vector.broadcast %39 : vector<1x16xf32> to vector<8x16xf32>
    %41 = arith.subf %33, %40 : vector<8x16xf32>
    %42 = arith.mulf %41, %41 : vector<8x16xf32>
    %cst_20 = arith.constant dense<0.000000e+00> : vector<16xf32>
    %43 = vector.multi_reduction <add>, %42, %cst_20 [0] : vector<8x16xf32> to vector<16xf32>
    %44 = vector.shape_cast %43 : vector<16xf32> to vector<1x16xf32>
    %cst_21 = arith.constant 8.000000e+00 : f32
    %45 = vector.broadcast %cst_21 : f32 to vector<1x16xf32>
    %46 = arith.divf %44, %45 : vector<1x16xf32>
    %cst_22 = arith.constant 9.99999974E-6 : f32
    %47 = vector.broadcast %cst_22 : f32 to vector<1x16xf32>
    %48 = arith.addf %46, %47 : vector<1x16xf32>
    %49 = math.rsqrt %48 : vector<1x16xf32>
    %50 = arith.mulf %34, %49 : vector<1x16xf32>
    %51 = vector.broadcast %50 : vector<1x16xf32> to vector<8x16xf32>
    %52 = arith.mulf %41, %51 : vector<8x16xf32>
    %53 = vector.broadcast %35 : vector<1x16xf32> to vector<8x16xf32>
    %54 = arith.addf %52, %53 : vector<8x16xf32>
    %cst_23 = arith.constant 0.000000e+00 : f32
    %55 = vector.broadcast %cst_23 : f32 to vector<8x16xf32>
    %56 = arith.maximumf %54, %55 : vector<8x16xf32>
    %c96 = arith.constant 96 : index
    %c0_24 = arith.constant 0 : index
    %57 = vector.load %arg1[%c96, %c0_24] : memref<128x32xf32, #tpu.memory_space<vmem>>, vector<16x16xf32>
    %cst_25 = arith.constant dense<0.000000e+00> : vector<8x16xf32>
    %58 = tpu.matmul %56, %57, %cst_25 {dimension_numbers = #tpu.dot_dimension_numbers<[1], [0], [0], [1], [0, 0, 1, 1], [], []>} : vector<8x16xf32>, vector<16x16xf32>, vector<8x16xf32> -> vector<8x16xf32>
    %c2 = arith.constant 2 : index
    %c0_26 = arith.constant 0 : index
    %59 = vector.load %arg2[%c2, %c0_26] : memref<16x128xf32, #tpu.memory_space<vmem>>, vector<1x16xf32>
    %60 = vector.broadcast %59 : vector<1x16xf32> to vector<8x16xf32>
    %61 = arith.addf %58, %60 : vector<8x16xf32>
    %c7_27 = arith.constant 7 : index
    %c0_28 = arith.constant 0 : index
    %62 = vector.load %arg2[%c7_27, %c0_28] : memref<16x128xf32, #tpu.memory_space<vmem>>, vector<1x16xf32>
    %c8_29 = arith.constant 8 : index
    %c0_30 = arith.constant 0 : index
    %63 = vector.load %arg2[%c8_29, %c0_30] : memref<16x128xf32, #tpu.memory_space<vmem>>, vector<1x16xf32>
    %cst_31 = arith.constant dense<0.000000e+00> : vector<16xf32>
    %64 = vector.multi_reduction <add>, %61, %cst_31 [0] : vector<8x16xf32> to vector<16xf32>
    %65 = vector.shape_cast %64 : vector<16xf32> to vector<1x16xf32>
    %cst_32 = arith.constant 8.000000e+00 : f32
    %66 = vector.broadcast %cst_32 : f32 to vector<1x16xf32>
    %67 = arith.divf %65, %66 : vector<1x16xf32>
    %68 = vector.broadcast %67 : vector<1x16xf32> to vector<8x16xf32>
    %69 = arith.subf %61, %68 : vector<8x16xf32>
    %70 = arith.mulf %69, %69 : vector<8x16xf32>
    %cst_33 = arith.constant dense<0.000000e+00> : vector<16xf32>
    %71 = vector.multi_reduction <add>, %70, %cst_33 [0] : vector<8x16xf32> to vector<16xf32>
    %72 = vector.shape_cast %71 : vector<16xf32> to vector<1x16xf32>
    %cst_34 = arith.constant 8.000000e+00 : f32
    %73 = vector.broadcast %cst_34 : f32 to vector<1x16xf32>
    %74 = arith.divf %72, %73 : vector<1x16xf32>
    %cst_35 = arith.constant 9.99999974E-6 : f32
    %75 = vector.broadcast %cst_35 : f32 to vector<1x16xf32>
    %76 = arith.addf %74, %75 : vector<1x16xf32>
    %77 = math.rsqrt %76 : vector<1x16xf32>
    %78 = arith.mulf %62, %77 : vector<1x16xf32>
    %79 = vector.broadcast %78 : vector<1x16xf32> to vector<8x16xf32>
    %80 = arith.mulf %69, %79 : vector<8x16xf32>
    %81 = vector.broadcast %63 : vector<1x16xf32> to vector<8x16xf32>
    %82 = arith.addf %80, %81 : vector<8x16xf32>
    %cst_36 = arith.constant 0.000000e+00 : f32
    %83 = vector.broadcast %cst_36 : f32 to vector<8x16xf32>
    %84 = arith.maximumf %82, %83 : vector<8x16xf32>
    %c112 = arith.constant 112 : index
    %c0_37 = arith.constant 0 : index
    %85 = vector.load %arg1[%c112, %c0_37] : memref<128x32xf32, #tpu.memory_space<vmem>>, vector<16x4xf32>
    %cst_38 = arith.constant dense<0.000000e+00> : vector<8x4xf32>
    %86 = tpu.matmul %84, %85, %cst_38 {dimension_numbers = #tpu.dot_dimension_numbers<[1], [0], [0], [1], [0, 0, 1, 1], [], []>} : vector<8x16xf32>, vector<16x4xf32>, vector<8x4xf32> -> vector<8x4xf32>
    %c3 = arith.constant 3 : index
    %c0_39 = arith.constant 0 : index
    %87 = vector.load %arg2[%c3, %c0_39] : memref<16x128xf32, #tpu.memory_space<vmem>>, vector<1x4xf32>
    %88 = vector.broadcast %87 : vector<1x4xf32> to vector<8x4xf32>
    %89 = arith.addf %86, %88 : vector<8x4xf32>
    %c9 = arith.constant 9 : index
    %c0_40 = arith.constant 0 : index
    %90 = vector.load %arg2[%c9, %c0_40] : memref<16x128xf32, #tpu.memory_space<vmem>>, vector<1x4xf32>
    %91 = vector.broadcast %90 : vector<1x4xf32> to vector<8x4xf32>
    %92 = arith.mulf %89, %91 : vector<8x4xf32>
    %cst_41 = arith.constant dense<0.000000e+00> : vector<8xf32>
    %93 = vector.multi_reduction <add>, %92, %cst_41 [1] : vector<8x4xf32> to vector<8xf32>
    %94 = vector.shape_cast %93 : vector<8xf32> to vector<8x1xf32>
    %c4 = arith.constant 4 : index
    %c0_42 = arith.constant 0 : index
    %95 = vector.load %arg2[%c4, %c0_42] : memref<16x128xf32, #tpu.memory_space<vmem>>, vector<1x1xf32>
    %96 = vector.broadcast %95 : vector<1x1xf32> to vector<8x1xf32>
    %97 = arith.addf %94, %96 : vector<8x1xf32>
    %cst_43 = arith.constant 0.000000e+00 : f32
    %98 = vector.broadcast %cst_43 : f32 to vector<8x128xf32>
    %c0_44 = arith.constant 0 : index
    %c0_45 = arith.constant 0 : index
    %99 = vector.load %arg3[%c0_44, %c0_45] : memref<8x128xf32, #tpu.memory_space<vmem>>, vector<8x128xf32>
    tpu.vector_store %arg3[%c0_44, %c0_45], %98 {strides = array<i32>} : memref<8x128xf32, #tpu.memory_space<vmem>>, vector<8x128xf32>,
    %c0_46 = arith.constant 0 : index
    %c0_47 = arith.constant 0 : index
    %100 = vector.load %arg3[%c0_46, %c0_47] : memref<8x128xf32, #tpu.memory_space<vmem>>, vector<8x4xf32>
    tpu.vector_store %arg3[%c0_46, %c0_47], %89 {strides = array<i32>} : memref<8x128xf32, #tpu.memory_space<vmem>>, vector<8x4xf32>,
    %c0_48 = arith.constant 0 : index
    %c4_49 = arith.constant 4 : index
    %101 = vector.load %arg3[%c0_48, %c4_49] : memref<8x128xf32, #tpu.memory_space<vmem>>, vector<8x1xf32>
    tpu.vector_store %arg3[%c0_48, %c4_49], %97 {strides = array<i32>} : memref<8x128xf32, #tpu.memory_space<vmem>>, vector<8x1xf32>,
    return
  }
}

</mosaic_0001>

<llo_original>
// kernel: tpu_custom_call.1
$region0: #{tpu_custom_call.1}
  #allocation0 [shape = 'u32[]', space=smem, size = 0x4, offset = 0x4, fixed_abs, tag = 'smem constant byte address 0x4 - core index']
  #allocation1 [shape = 'u32[144,128]{1,0:T(1,128)}', space=vmem, size = 0x12000, scoped, tag = 'internal scratch']
  %s0 = inlined_call_operand.vmem [shape: f32[8,64], index: 0, kind: input, shape index: {}]
  %s1 = inlined_call_operand.vmem [shape: f32[128,32], index: 1, kind: input, shape index: {}]
  %s2 = inlined_call_operand.vmem [shape: f32[16,128], index: 2, kind: input, shape index: {}]
  %s3 = inlined_call_operand.hbm [shape: f32[8,128], index: 3, kind: output, shape index: {}]
  %s4 = sld [smem:[#allocation0]]
  $region22: #{tpu_custom_call.1} parent=0
    _
  %s6 = ssub.s32 1, %s4
  %s7 = scalar_select 0, %s6, %s4
  $region1: #{tpu_custom_call.1} parent=0
    #allocation2 [shape = 'u8[4096]{0}', space=vmem, size = 0x1000, scoped, tag = 'output window, operand 0, single buffered']
    #allocation3 [shape = 's32[1]{0}', space=sflag, size = 0x4, scoped, tag = 'scoped memory for tpu_custom_call.1']
    %8 = vsyncpa [#allocation3], 0
    // Predicated region
    $region2: #{tpu_custom_call.1} parent=1 // pred_check
      _
    $region3: #{tpu_custom_call.1} parent=1 // pred_check_branch
      %10 = sbr.rel (0) target = $region5
    $region4: #{tpu_custom_call.1} parent=1 // pred_region
      _
    $region5: #{tpu_custom_call.1} parent=1 // pred_fallthru
      _
    // Predicated region
    $region6: #{tpu_custom_call.1} parent=1 // pred_check
      _
    $region7: #{tpu_custom_call.1} parent=1 // pred_check_branch
      %12 = sbr.rel (0) target = $region9
    $region8: #{tpu_custom_call.1} parent=1 // pred_region
      _
    $region9: #{tpu_custom_call.1} parent=1 // pred_fallthru
      _
    // Predicated region
    $region10: #{tpu_custom_call.1} parent=1 // pred_check
      _
    $region11: #{tpu_custom_call.1} parent=1 // pred_check_branch
      %14 = sbr.rel (0) target = $region13
    $region12: #{tpu_custom_call.1} parent=1 // pred_region
      _
    $region13: #{tpu_custom_call.1} parent=1 // pred_fallthru
      _
    %v15 = vld [vmem:[%s0] sm:$0xff]
    %v16 = vld [vmem:[%s1] sm:$0xff]
    %v17 = vld [vmem:[%s1 + $0x8] sm:$0xff]
    %v18 = vld [vmem:[%s1 + $0x10] sm:$0xff]
    %v19 = vld [vmem:[%s1 + $0x18] sm:$0xff]
    %v20 = vld [vmem:[%s1 + $0x20] sm:$0xff]
    %v21 = vld [vmem:[%s1 + $0x28] sm:$0xff]
    %v22 = vld [vmem:[%s1 + $0x30] sm:$0xff]
    %v23 = vld [vmem:[%s1 + $0x38] sm:$0xff]
    %v24 = vld [vmem:[%s2] sm:$0x1]
    %v25 = vlaneseq
    %v26 = vshrl.u32 %v25, 7
    %v27 = vsub.s32 0, %v26
    %v28 = vrot.slane %v24, %v27
    %vm29 = vcmask 523264
    %v31 = vsel %vm29, %v15, 0
    %33 = vmatprep.subr.mxu0 0.0
    %34 = vmatpush1.msra.mxu0 0.0
    %35 = vmatprep.subr.mxu0 0.0
    %36 = vmatpush1.msra.mxu0 0.0
    %37 = vmatprep.subr.mxu0 0.0
    %38 = vmatpush1.msra.mxu0 0.0
    %39 = vmatprep.subr.mxu0 0.0
    %40 = vmatpush1.msra.mxu0 0.0
    %41 = vmatprep.subr.mxu0 0.0
    %42 = vmatpush1.msra.mxu0 0.0
    %43 = vmatprep.subr.mxu0 0.0
    %44 = vmatpush1.msra.mxu0 0.0
    %45 = vmatprep.subr.mxu0 0.0
    %46 = vmatpush1.msra.mxu0 0.0
    %47 = vmatprep.subr.mxu0 0.0
    %48 = vmatpush1.msra.mxu0 0.0
    %49 = vmatprep.subr.mxu0 0.0
    %50 = vmatpush1.msra.mxu0 %v23
    %51 = vmatprep.subr.mxu0 0.0
    %52 = vmatpush1.msra.mxu0 %v22
    %53 = vmatprep.subr.mxu0 0.0
    %54 = vmatpush1.msra.mxu0 %v21
    %55 = vmatprep.subr.mxu0 0.0
    %56 = vmatpush1.msra.mxu0 %v20
    %57 = vmatprep.subr.mxu0 0.0
    %58 = vmatpush1.msra.mxu0 %v19
    %59 = vmatprep.subr.mxu0 0.0
    %60 = vmatpush1.msra.mxu0 %v18
    %61 = vmatprep.subr.mxu0 0.0
    %62 = vmatpush1.msra.mxu0 %v17
    %63 = vmatprep.subr.mxu0 0.0
    %64 = vmatpush1.msra.mxu0 %v16
    %65 = vmatprep.subr.mxu0 0.0
    %66 = vmatpush2.msra.mxu0 0.0
    %67 = vmatprep.subr.mxu0 0.0
    %68 = vmatpush2.msra.mxu0 0.0
    %69 = vmatprep.subr.mxu0 0.0
    %70 = vmatpush2.msra.mxu0 0.0
    %71 = vmatprep.subr.mxu0 0.0
    %72 = vmatpush2.msra.mxu0 0.0
    %73 = vmatprep.subr.mxu0 0.0
    %74 = vmatpush2.msra.mxu0 0.0
    %75 = vmatprep.subr.mxu0 0.0
    %76 = vmatpush2.msra.mxu0 0.0
    %77 = vmatprep.subr.mxu0 0.0
    %78 = vmatpush2.msra.mxu0 0.0
    %79 = vmatprep.subr.mxu0 0.0
    %80 = vmatpush2.msra.mxu0 0.0
    %81 = vmatprep.subr.mxu0 0.0
    %82 = vmatpush2.msra.mxu0 0.0
    %83 = vmatprep.subr.mxu0 0.0
    %84 = vmatpush2.msra.mxu0 0.0
    %85 = vmatprep.subr.mxu0 0.0
    %86 = vmatpush2.msra.mxu0 0.0
    %87 = vmatprep.subr.mxu0 0.0
    %88 = vmatpush2.msra.mxu0 0.0
    %89 = vmatprep.subr.mxu0 0.0
    %90 = vmatpush2.msra.mxu0 0.0
    %91 = vmatprep.subr.mxu0 0.0
    %92 = vmatpush2.msra.mxu0 0.0
    %93 = vmatprep.subr.mxu0 0.0
    %94 = vmatpush2.msra.mxu0 0.0
    %95 = vmatprep.subr.mxu0 0.0
    %96 = vmatpush2.msra.mxu0 0.0
    %97 = vmatprep.mubr.f32.mxu0 0.0
    %98 = vmatmul.mubr.f32.gmra.mxu0 %v31
    %v99 = vpop.f32.mrf.mxu0
    %v100 = vadd.f32 %v28, %v99
    %v101 = vpop.f32.mrf.mxu0
    %102 = vdwg.mxu0
    %v103 = vld [vmem:[%s2 + $0x5] sm:$0x1]
    %v104 = vld [vmem:[%s2 + $0x6] sm:$0x1]
    %vm105 = vcmask 261120
    %v106 = vsel %vm105, %v100, 0.0
    %v107 = vrot.slane %v106, 4
    %v108 = vadd.f32 %v106, %v107
    %v109 = vrot.slane %v108, 2
    %v110 = vadd.f32 %v108, %v109
    %v111 = vrot.slane %v110, 1
    %v112 = vadd.f32 %v110, %v111
    %v113 = vrcp.pop 8.0
    %v114 = vmul.f32 %v112, %v113
    %v115 = vsub.f32 %v100, %v114
    %v116 = vmul.f32 %v115, %v115
    %v117 = vsel %vm105, %v116, 0.0
    %v118 = vrot.slane %v117, 4
    %v119 = vadd.f32 %v117, %v118
    %v120 = vrot.slane %v119, 2
    %v121 = vadd.f32 %v119, %v120
    %v122 = vrot.slane %v121, 1
    %v123 = vadd.f32 %v121, %v122
    %v124 = vmul.f32 %v123, %v113
    %v125 = vadd.f32 %v124, 1e-05
    %v126 = vrsqrt.pop %v125
    %v127 = vmul.f32 %v103, %v126
    %v128 = vlaneseq
    %v129 = vshrl.u32 %v128, 7
    %v130 = vsub.s32 0, %v129
    %v131 = vrot.slane %v127, %v130
    %v132 = vmul.f32 %v115, %v131
    %v133 = vlaneseq
    %v134 = vshrl.u32 %v133, 7
    %v135 = vsub.s32 0, %v134
    %v136 = vrot.slane %v104, %v135
    %v137 = vadd.f32 %v132, %v136
    %v138 = vmax.f32 %v137, 0.0
    %v139 = vld [vmem:[%s1 + $0x40] sm:$0xff]
    %v140 = vld [vmem:[%s1 + $0x48] sm:$0xff]
    %v141 = vld [vmem:[%s1 + $0x50] sm:$0xff]
    %v142 = vld [vmem:[%s1 + $0x58] sm:$0xff]
    %v143 = vld [vmem:[%s2 + $0x1] sm:$0x1]
    %v144 = vlaneseq
    %v145 = vshrl.u32 %v144, 7
    %v146 = vsub.s32 0, %v145
    %v147 = vrot.slane %v143, %v146
    %v149 = vsel %vm105, %v138, 0
    %151 = vmatprep.subr.mxu0 0.0
    %152 = vmatpush1.msra.mxu0 0.0
    %153 = vmatprep.subr.mxu0 0.0
    %154 = vmatpush1.msra.mxu0 0.0
    %155 = vmatprep.subr.mxu0 0.0
    %156 = vmatpush1.msra.mxu0 0.0
    %157 = vmatprep.subr.mxu0 0.0
    %158 = vmatpush1.msra.mxu0 0.0
    %159 = vmatprep.subr.mxu0 0.0
    %160 = vmatpush1.msra.mxu0 0.0
    %161 = vmatprep.subr.mxu0 0.0
    %162 = vmatpush1.msra.mxu0 0.0
    %163 = vmatprep.subr.mxu0 0.0
    %164 = vmatpush1.msra.mxu0 0.0
    %165 = vmatprep.subr.mxu0 0.0
    %166 = vmatpush1.msra.mxu0 0.0
    %167 = vmatprep.subr.mxu0 0.0
    %168 = vmatpush1.msra.mxu0 0.0
    %169 = vmatprep.subr.mxu0 0.0
    %170 = vmatpush1.msra.mxu0 0.0
    %171 = vmatprep.subr.mxu0 0.0
    %172 = vmatpush1.msra.mxu0 0.0
    %173 = vmatprep.subr.mxu0 0.0
    %174 = vmatpush1.msra.mxu0 0.0
    %175 = vmatprep.subr.mxu0 0.0
    %176 = vmatpush1.msra.mxu0 %v142
    %177 = vmatprep.subr.mxu0 0.0
    %178 = vmatpush1.msra.mxu0 %v141
    %179 = vmatprep.subr.mxu0 0.0
    %180 = vmatpush1.msra.mxu0 %v140
    %181 = vmatprep.subr.mxu0 0.0
    %182 = vmatpush1.msra.mxu0 %v139
    %183 = vmatprep.subr.mxu0 0.0
    %184 = vmatpush2.msra.mxu0 0.0
    %185 = vmatprep.subr.mxu0 0.0
    %186 = vmatpush2.msra.mxu0 0.0
    %187 = vmatprep.subr.mxu0 0.0
    %188 = vmatpush2.msra.mxu0 0.0
    %189 = vmatprep.subr.mxu0 0.0
    %190 = vmatpush2.msra.mxu0 0.0
    %191 = vmatprep.subr.mxu0 0.0
    %192 = vmatpush2.msra.mxu0 0.0
    %193 = vmatprep.subr.mxu0 0.0
    %194 = vmatpush2.msra.mxu0 0.0
    %195 = vmatprep.subr.mxu0 0.0
    %196 = vmatpush2.msra.mxu0 0.0
    %197 = vmatprep.subr.mxu0 0.0
    %198 = vmatpush2.msra.mxu0 0.0
    %199 = vmatprep.subr.mxu0 0.0
    %200 = vmatpush2.msra.mxu0 0.0
    %201 = vmatprep.subr.mxu0 0.0
    %202 = vmatpush2.msra.mxu0 0.0
    %203 = vmatprep.subr.mxu0 0.0
    %204 = vmatpush2.msra.mxu0 0.0
    %205 = vmatprep.subr.mxu0 0.0
    %206 = vmatpush2.msra.mxu0 0.0
    %207 = vmatprep.subr.mxu0 0.0
    %208 = vmatpush2.msra.mxu0 0.0
    %209 = vmatprep.subr.mxu0 0.0
    %210 = vmatpush2.msra.mxu0 0.0
    %211 = vmatprep.subr.mxu0 0.0
    %212 = vmatpush2.msra.mxu0 0.0
    %213 = vmatprep.subr.mxu0 0.0
    %214 = vmatpush2.msra.mxu0 0.0
    %215 = vmatprep.mubr.f32.mxu0 0.0
    %216 = vmatmul.mubr.f32.gmra.mxu0 %v149
    %v217 = vpop.f32.mrf.mxu0
    %v218 = vadd.f32 %v147, %v217
    %v219 = vpop.f32.mrf.mxu0
    %220 = vdwg.mxu0
    %v221 = vld [vmem:[%s2 + $0x7] sm:$0x1]
    %v222 = vld [vmem:[%s2 + $0x8] sm:$0x1]
    %vm223 = vcmask 130048
    %v224 = vsel %vm223, %v218, 0.0
    %v225 = vrot.slane %v224, 4
    %v226 = vadd.f32 %v224, %v225
    %v227 = vrot.slane %v226, 2
    %v228 = vadd.f32 %v226, %v227
    %v229 = vrot.slane %v228, 1
    %v230 = vadd.f32 %v228, %v229
    %v231 = vmul.f32 %v230, %v113
    %v232 = vsub.f32 %v218, %v231
    %v233 = vmul.f32 %v232, %v232
    %v234 = vsel %vm223, %v233, 0.0
    %v235 = vrot.slane %v234, 4
    %v236 = vadd.f32 %v234, %v235
    %v237 = vrot.slane %v236, 2
    %v238 = vadd.f32 %v236, %v237
    %v239 = vrot.slane %v238, 1
    %v240 = vadd.f32 %v238, %v239
    %v241 = vmul.f32 %v240, %v113
    %v242 = vadd.f32 %v241, 1e-05
    %v243 = vrsqrt.pop %v242
    %v244 = vmul.f32 %v221, %v243
    %v245 = vlaneseq
    %v246 = vshrl.u32 %v245, 7
    %v247 = vsub.s32 0, %v246
    %v248 = vrot.slane %v244, %v247
    %v249 = vmul.f32 %v232, %v248
    %v250 = vlaneseq
    %v251 = vshrl.u32 %v250, 7
    %v252 = vsub.s32 0, %v251
    %v253 = vrot.slane %v222, %v252
    %v254 = vadd.f32 %v249, %v253
    %v255 = vmax.f32 %v254, 0.0
    %v256 = vld [vmem:[%s1 + $0x60] sm:$0xff]
    %v257 = vld [vmem:[%s1 + $0x68] sm:$0xff]
    %v258 = vld [vmem:[%s2 + $0x2] sm:$0x1]
    %v259 = vlaneseq
    %v260 = vshrl.u32 %v259, 7
    %v261 = vsub.s32 0, %v260
    %v262 = vrot.slane %v258, %v261
    %v264 = vsel %vm223, %v255, 0
    %266 = vmatprep.subr.mxu0 0.0
    %267 = vmatpush1.msra.mxu0 0.0
    %268 = vmatprep.subr.mxu0 0.0
    %269 = vmatpush1.msra.mxu0 0.0
    %270 = vmatprep.subr.mxu0 0.0
    %271 = vmatpush1.msra.mxu0 0.0
    %272 = vmatprep.subr.mxu0 0.0
    %273 = vmatpush1.msra.mxu0 0.0
    %274 = vmatprep.subr.mxu0 0.0
    %275 = vmatpush1.msra.mxu0 0.0
    %276 = vmatprep.subr.mxu0 0.0
    %277 = vmatpush1.msra.mxu0 0.0
    %278 = vmatprep.subr.mxu0 0.0
    %279 = vmatpush1.msra.mxu0 0.0
    %280 = vmatprep.subr.mxu0 0.0
    %281 = vmatpush1.msra.mxu0 0.0
    %282 = vmatprep.subr.mxu0 0.0
    %283 = vmatpush1.msra.mxu0 0.0
    %284 = vmatprep.subr.mxu0 0.0
    %285 = vmatpush1.msra.mxu0 0.0
    %286 = vmatprep.subr.mxu0 0.0
    %287 = vmatpush1.msra.mxu0 0.0
    %288 = vmatprep.subr.mxu0 0.0
    %289 = vmatpush1.msra.mxu0 0.0
    %290 = vmatprep.subr.mxu0 0.0
    %291 = vmatpush1.msra.mxu0 0.0
    %292 = vmatprep.subr.mxu0 0.0
    %293 = vmatpush1.msra.mxu0 0.0
    %294 = vmatprep.subr.mxu0 0.0
    %295 = vmatpush1.msra.mxu0 %v257
    %296 = vmatprep.subr.mxu0 0.0
    %297 = vmatpush1.msra.mxu0 %v256
    %298 = vmatprep.subr.mxu0 0.0
    %299 = vmatpush2.msra.mxu0 0.0
    %300 = vmatprep.subr.mxu0 0.0
    %301 = vmatpush2.msra.mxu0 0.0
    %302 = vmatprep.subr.mxu0 0.0
    %303 = vmatpush2.msra.mxu0 0.0
    %304 = vmatprep.subr.mxu0 0.0
    %305 = vmatpush2.msra.mxu0 0.0
    %306 = vmatprep.subr.mxu0 0.0
    %307 = vmatpush2.msra.mxu0 0.0
    %308 = vmatprep.subr.mxu0 0.0
    %309 = vmatpush2.msra.mxu0 0.0
    %310 = vmatprep.subr.mxu0 0.0
    %311 = vmatpush2.msra.mxu0 0.0
    %312 = vmatprep.subr.mxu0 0.0
    %313 = vmatpush2.msra.mxu0 0.0
    %314 = vmatprep.subr.mxu0 0.0
    %315 = vmatpush2.msra.mxu0 0.0
    %316 = vmatprep.subr.mxu0 0.0
    %317 = vmatpush2.msra.mxu0 0.0
    %318 = vmatprep.subr.mxu0 0.0
    %319 = vmatpush2.msra.mxu0 0.0
    %320 = vmatprep.subr.mxu0 0.0
    %321 = vmatpush2.msra.mxu0 0.0
    %322 = vmatprep.subr.mxu0 0.0
    %323 = vmatpush2.msra.mxu0 0.0
    %324 = vmatprep.subr.mxu0 0.0
    %325 = vmatpush2.msra.mxu0 0.0
    %326 = vmatprep.subr.mxu0 0.0
    %327 = vmatpush2.msra.mxu0 0.0
    %328 = vmatprep.subr.mxu0 0.0
    %329 = vmatpush2.msra.mxu0 0.0
    %330 = vmatprep.mubr.f32.mxu0 0.0
    %331 = vmatmul.mubr.f32.gmra.mxu0 %v264
    %v332 = vpop.f32.mrf.mxu0
    %v333 = vadd.f32 %v262, %v332
    %v334 = vpop.f32.mrf.mxu0
    %335 = vdwg.mxu0
    %v336 = vsel %vm223, %v333, 0.0
    %v337 = vrot.slane %v336, 4
    %v338 = vadd.f32 %v336, %v337
    %v339 = vrot.slane %v338, 2
    %v340 = vadd.f32 %v338, %v339
    %v341 = vrot.slane %v340, 1
    %v342 = vadd.f32 %v340, %v341
    %v343 = vmul.f32 %v342, %v113
    %v344 = vsub.f32 %v333, %v343
    %v345 = vmul.f32 %v344, %v344
    %v346 = vsel %vm223, %v345, 0.0
    %v347 = vrot.slane %v346, 4
    %v348 = vadd.f32 %v346, %v347
    %v349 = vrot.slane %v348, 2
    %v350 = vadd.f32 %v348, %v349
    %v351 = vrot.slane %v350, 1
    %v352 = vadd.f32 %v350, %v351
    %v353 = vmul.f32 %v352, %v113
    %v354 = vadd.f32 %v353, 1e-05
    %v355 = vrsqrt.pop %v354
    %v356 = vmul.f32 %v221, %v355
    %v357 = vlaneseq
    %v358 = vshrl.u32 %v357, 7
    %v359 = vsub.s32 0, %v358
    %v360 = vrot.slane %v356, %v359
    %v361 = vmul.f32 %v344, %v360
    %v362 = vadd.f32 %v361, %v253
    %v363 = vmax.f32 %v362, 0.0
    %v364 = vld [vmem:[%s1 + $0x70] sm:$0xff]
    %v365 = vld [vmem:[%s1 + $0x78] sm:$0xff]
    %v366 = vld [vmem:[%s2 + $0x3] sm:$0x1]
    %v367 = vlaneseq
    %v368 = vshrl.u32 %v367, 7
    %v369 = vsub.s32 0, %v368
    %v370 = vrot.slane %v366, %v369
    %v372 = vsel %vm223, %v363, 0
    %374 = vmatprep.subr.mxu0 0.0
    %375 = vmatpush1.msra.mxu0 0.0
    %376 = vmatprep.subr.mxu0 0.0
    %377 = vmatpush1.msra.mxu0 0.0
    %378 = vmatprep.subr.mxu0 0.0
    %379 = vmatpush1.msra.mxu0 0.0
    %380 = vmatprep.subr.mxu0 0.0
    %381 = vmatpush1.msra.mxu0 0.0
    %382 = vmatprep.subr.mxu0 0.0
    %383 = vmatpush1.msra.mxu0 0.0
    %384 = vmatprep.subr.mxu0 0.0
    %385 = vmatpush1.msra.mxu0 0.0
    %386 = vmatprep.subr.mxu0 0.0
    %387 = vmatpush1.msra.mxu0 0.0
    %388 = vmatprep.subr.mxu0 0.0
    %389 = vmatpush1.msra.mxu0 0.0
    %390 = vmatprep.subr.mxu0 0.0
    %391 = vmatpush1.msra.mxu0 0.0
    %392 = vmatprep.subr.mxu0 0.0
    %393 = vmatpush1.msra.mxu0 0.0
    %394 = vmatprep.subr.mxu0 0.0
    %395 = vmatpush1.msra.mxu0 0.0
    %396 = vmatprep.subr.mxu0 0.0
    %397 = vmatpush1.msra.mxu0 0.0
    %398 = vmatprep.subr.mxu0 0.0
    %399 = vmatpush1.msra.mxu0 0.0
    %400 = vmatprep.subr.mxu0 0.0
    %401 = vmatpush1.msra.mxu0 0.0
    %402 = vmatprep.subr.mxu0 0.0
    %403 = vmatpush1.msra.mxu0 %v365
    %404 = vmatprep.subr.mxu0 0.0
    %405 = vmatpush1.msra.mxu0 %v364
    %406 = vmatprep.subr.mxu0 0.0
    %407 = vmatpush2.msra.mxu0 0.0
    %408 = vmatprep.subr.mxu0 0.0
    %409 = vmatpush2.msra.mxu0 0.0
    %410 = vmatprep.subr.mxu0 0.0
    %411 = vmatpush2.msra.mxu0 0.0
    %412 = vmatprep.subr.mxu0 0.0
    %413 = vmatpush2.msra.mxu0 0.0
    %414 = vmatprep.subr.mxu0 0.0
    %415 = vmatpush2.msra.mxu0 0.0
    %416 = vmatprep.subr.mxu0 0.0
    %417 = vmatpush2.msra.mxu0 0.0
    %418 = vmatprep.subr.mxu0 0.0
    %419 = vmatpush2.msra.mxu0 0.0
    %420 = vmatprep.subr.mxu0 0.0
    %421 = vmatpush2.msra.mxu0 0.0
    %422 = vmatprep.subr.mxu0 0.0
    %423 = vmatpush2.msra.mxu0 0.0
    %424 = vmatprep.subr.mxu0 0.0
    %425 = vmatpush2.msra.mxu0 0.0
    %426 = vmatprep.subr.mxu0 0.0
    %427 = vmatpush2.msra.mxu0 0.0
    %428 = vmatprep.subr.mxu0 0.0
    %429 = vmatpush2.msra.mxu0 0.0
    %430 = vmatprep.subr.mxu0 0.0
    %431 = vmatpush2.msra.mxu0 0.0
    %432 = vmatprep.subr.mxu0 0.0
    %433 = vmatpush2.msra.mxu0 0.0
    %434 = vmatprep.subr.mxu0 0.0
    %435 = vmatpush2.msra.mxu0 0.0
    %436 = vmatprep.subr.mxu0 0.0
    %437 = vmatpush2.msra.mxu0 0.0
    %438 = vmatprep.mubr.f32.mxu0 0.0
    %439 = vmatmul.mubr.f32.gmra.mxu0 %v372
    %v440 = vpop.f32.mrf.mxu0
    %v441 = vadd.f32 %v370, %v440
    %v442 = vpop.f32.mrf.mxu0
    %443 = vdwg.mxu0
    %v444 = vld [vmem:[%s2 + $0x9] sm:$0x1]
    %v445 = vlaneseq
    %v446 = vshrl.u32 %v445, 7
    %v447 = vsub.s32 0, %v446
    %v448 = vrot.slane %v444, %v447
    %v449 = vmul.f32 %v441, %v448
    %vm450 = vcmask 31744
    %v451 = vsel %vm450, %v449, 0.0
    %452 = vadd.xlane.f32.xlu0 %v451
    %v453 = vpop.xlane.xlu0 %452
    %v454 = vld [vmem:[%s2 + $0x4] sm:$0x1]
    %v455 = vlaneseq
    %v456 = vshrl.u32 %v455, 7
    %v457 = vsub.s32 0, %v456
    %v458 = vrot.slane %v454, %v457
    %v459 = vadd.f32 %v453, %v458
    %460 = vst [vmem:[#allocation2] sm:$0xff] 0.0
    %461 = vst.msk [vmem:[#allocation2] sm:$0xff] %vm450, %v441
    %463 = vrot.lane.b32.xlu0 %v459, 4
    %v464 = vpop.permute.xlu0 %463
    %vm466 = vcmask 39968
    %467 = vst.msk [vmem:[#allocation2] sm:$0xff] %vm466, %v464
    // Predicated region
    $region14: #{tpu_custom_call.1} parent=1 // pred_check
      _
    $region15: #{tpu_custom_call.1} parent=1 // pred_check_branch
      %469 = sbr.rel (0) target = $region17
    $region16: #{tpu_custom_call.1} parent=1 // pred_region
      %s471 = ssub.s32 128, 128
      %472 = vsyncadd [#allocation3], %s471
      %s474 = sshll.u32 [#allocation2], 4
      %s475 = int_to_ptr.vmem [resolvable:$true] %s474
      %477 = dma.vmem_to_hbm [thread:$0]  %s475, 128, %s3, [#allocation3]
    $region17: #{tpu_custom_call.1} parent=1 // pred_fallthru
      _
    // Predicated region
    $region18: #{tpu_custom_call.1} parent=1 // pred_check
      _
    $region19: #{tpu_custom_call.1} parent=1 // pred_check_branch
      %479 = sbr.rel (0) target = $region21
    $region20: #{tpu_custom_call.1} parent=1 // pred_region
      %480 = dma.done [#allocation3], 128
    $region21: #{tpu_custom_call.1} parent=1 // pred_fallthru
      _
    %481 = vsyncpa [#allocation3], 1

</llo_original>
